<compile_context>
chip_gen: v5e
topology: v5e:2x2
jax: 0.10.0
libtpu: 0.0.40
codegen_flags: <defaults>
</compile_context>

<pallas_src>
import numpy as np
import jax
import jax.numpy as jnp
from jax.experimental import pallas as pl
from jax.experimental.pallas import tpu as pltpu


def _round_up(a, b):
    return ((a + b - 1) // b) * b


def _fused_tap_matmul_kernel(x_ref, w_ref, o_ref):
    # x_ref: (TM, Kpad)   channels-last spatial tile (zero-padded K)
    # w_ref: (Kpad, Npad) all 9 conv-transpose taps fused along the lane dim
    # o_ref: (TM, Npad)   lane-dense slab, written exactly once
    o_ref[...] = jnp.dot(
        x_ref[...], w_ref[...], preferred_element_type=jnp.float32
    ).astype(o_ref.dtype)


def _pick_tile_m(M, Kpad, Npad, itemsize, budget_bytes):
    """Largest spatial tile whose (conservatively double-buffered) working set
    fits the VMEM budget.  Returns (TM, est_bytes)."""
    mp8 = _round_up(M, 8)
    cands = sorted(
        {c for c in (mp8 if mp8 <= 2048 else 0,
                     1024, 512, 256, 128, 64, 32, 16, 8)
         if 0 < c <= mp8},
        reverse=True)
    w_cost = 2 * Kpad * Npad * itemsize          # assume double-buffered weight
    est = None
    for tm in cands:
        est = 2 * tm * Kpad * itemsize + w_cost + 2 * tm * Npad * itemsize
        if est <= budget_bytes:
            return tm, est
    return cands[-1], est


def _run_fused_gemm(x_pad, w_pad, *, grid, TM, Kpad, Npad, out_dtype,
                    vmem_limit, single_buffer_weight):
    w_kwargs = {}
    if single_buffer_weight:
        # Weight is grid-invariant (constant index_map) -> one VMEM buffer.
        w_kwargs["pipeline_mode"] = pl.Buffered(1)
    n_batches, n_mtiles = grid
    MP = n_mtiles * TM
    return pl.pallas_call(
        _fused_tap_matmul_kernel,
        out_shape=jax.ShapeDtypeStruct((n_batches, MP, Npad), out_dtype),
        grid=grid,
        in_specs=[
            pl.BlockSpec((None, TM, Kpad), lambda n, m: (n, m, 0)),
            pl.BlockSpec((Kpad, Npad), lambda n, m: (0, 0), **w_kwargs),
        ],
        out_specs=pl.BlockSpec((None, TM, Npad), lambda n, m: (n, m, 0)),
        compiler_params=pltpu.CompilerParams(
            dimension_semantics=("parallel", "parallel"),
            vmem_limit_bytes=vmem_limit),
    )(x_pad, w_pad)


def transition_up(x, skip, weight, bias, compute_dtype=jnp.bfloat16):
    """x: (N, Cin, H, W), skip: (N, Cskip, Hs, Ws),
    weight: (Cin, Cout, 3, 3) (PyTorch ConvTranspose2d layout), bias: (Cout,).

    compute_dtype=jnp.bfloat16 (default) uses the fast MXU path with f32
    accumulation inside the kernel; pass jnp.float32 for exact PyTorch-f32
    numerics.
    """
    N, Cin, H, W = map(int, x.shape)
    Cout = int(weight.shape[1])
    Hs, Ws = int(skip.shape[2]), int(skip.shape[3])
    Hf, Wf = 2 * H + 1, 2 * W + 1

    # Fail loudly instead of silently returning bias-filled rows.
    assert Hs <= Hf and Ws <= Wf, (
        f"skip spatial ({Hs},{Ws}) must be <= transposed-conv output ({Hf},{Wf})")

    out_dt = x.dtype

    # ---- padded problem sizes ---------------------------------------------
    M = H * W
    if Cin % 128 == 0:
        Kpad = Cin
    elif Cin >= 96:
        Kpad = _round_up(Cin, 128)     # full systolic K fill, <=33% extra x bytes
    else:
        Kpad = _round_up(Cin, 8)       # skinny K: keep x HBM traffic small
    # Tap-major lane packing for wide Cout -> downstream reshape is a free view.
    Cpad = _round_up(Cout, 128) if Cout >= 128 else Cout
    Npad = _round_up(9 * Cpad, 128)    # lane-dense, unmasked vst stores

    itemsize = jnp.dtype(compute_dtype).itemsize
    TM, est = _pick_tile_m(M, Kpad, Npad, itemsize, budget_bytes=40 << 20)
    MP = _round_up(M, TM)
    vmem_limit = int(min(100 << 20, max(32 << 20, int(est * 1.25) + (2 << 20))))

    # ---- layout prep (XLA glue) --------------------------------------------
    # TODO(synk): if the consumer accepts NHWC activations, the NCHW<->NHWC
    # transposes at entry/exit can be dropped (two full HBM passes).
    x_flat = jnp.transpose(x, (0, 2, 3, 1)).reshape(N, M, Cin).astype(compute_dtype)
    x_pad = jnp.pad(x_flat, ((0, 0), (0, MP - M), (0, Kpad - Cin)))

    # weight (Cin, Cout, 3, 3) -> (Kpad, Npad); tap k = kh*3+kw occupies lanes
    # [k*Cpad, k*Cpad + Cout), zero elsewhere (zero pads contribute nothing).
    w_taps = jnp.transpose(weight, (2, 3, 0, 1)).reshape(9, Cin, Cout)
    w_taps = jnp.pad(w_taps.astype(compute_dtype),
                     ((0, 0), (0, Kpad - Cin), (0, Cpad - Cout)))
    w_pad = jnp.transpose(w_taps, (1, 0, 2)).reshape(Kpad, 9 * Cpad)
    w_pad = jnp.pad(w_pad, ((0, 0), (0, Npad - 9 * Cpad)))

    # ---- hot path: fused, lane-dense MXU GEMM ------------------------------
    gemm_kwargs = dict(grid=(N, MP // TM), TM=TM, Kpad=Kpad, Npad=Npad,
                       out_dtype=compute_dtype, vmem_limit=vmem_limit)
    if hasattr(pl, "Buffered"):
        try:
            slab = _run_fused_gemm(x_pad, w_pad, single_buffer_weight=True,
                                   **gemm_kwargs)
        except Exception:
            # Older jax: Buffered(1)/pipeline_mode unsupported -> default bufs.
            slab = _run_fused_gemm(x_pad, w_pad, single_buffer_weight=False,
                                   **gemm_kwargs)
    else:
        slab = _run_fused_gemm(x_pad, w_pad, single_buffer_weight=False,
                               **gemm_kwargs)

    # ---- phase scatter / pixel-shuffle / bias / crop / concat (XLA glue) ----
    taps = slab[:, :M, :9 * Cpad].reshape(N, H, W, 9, Cpad)[..., :Cout]
    taps = taps.astype(jnp.float32)

    # Tap (kh, kw) lands at output (2i+kh, 2j+kw).  Per phase (pr, pc), the
    # plane value at (p, q) is the sum of taps (pr+2dr, pc+2dc) taken at pixel
    # (p-dr, q-dc).  One halo pad + fused shifted adds per plane.
    tpad = jnp.pad(taps, ((0, 0), (1, 1), (1, 1), (0, 0), (0, 0)))
    planes = []
    for pr in range(2):
        for pc in range(2):
            acc = jnp.zeros((N, H + 1, W + 1, Cout), jnp.float32)
            for dr in range(2):
                kh = pr + 2 * dr
                if kh > 2:
                    continue
                for dc in range(2):
                    kw = pc + 2 * dc
                    if kw > 2:
                        continue
                    k = kh * 3 + kw
                    acc = acc + tpad[:, 1 - dr:H + 2 - dr, 1 - dc:W + 2 - dc, k, :]
            planes.append(acc)

    # Interleave phases: full[:, 2p+pr, 2q+pc, :] = planes[2*pr+pc][:, p, q, :]
    ph = jnp.stack(planes, axis=0).reshape(2, 2, N, H + 1, W + 1, Cout)
    full = jnp.transpose(ph, (2, 3, 0, 4, 1, 5)).reshape(
        N, 2 * (H + 1), 2 * (W + 1), Cout)

    # Center crop (same arithmetic as PyTorch center_crop) + bias, fused.
    oy = (Hf - Hs) // 2
    ox = (Wf - Ws) // 2
    cropped = full[:, oy:oy + Hs, ox:ox + Ws, :] + bias.astype(jnp.float32)

    # Channel concat with skip, back to NCHW (output dtype follows x, as in
    # the PyTorch module where both branches share the model dtype).
    skip_nhwc = jnp.transpose(skip, (0, 2, 3, 1)).astype(out_dt)
    out_nhwc = jnp.concatenate([cropped.astype(out_dt), skip_nhwc], axis=-1)
    return jnp.transpose(out_nhwc, (0, 3, 1, 2))     # (N, Cout+Cskip, Hs, Ws)


def ref_transition_up(x, weight, bias, skip):
    """NumPy reference mirroring PyTorch ConvTranspose2d(k=3, s=2, p=0) + crop + cat."""
    N, Cin, H, W = x.shape
    Cout = weight.shape[1]
    Hf, Wf = 2 * H + 1, 2 * W + 1
    out = np.zeros((N, Cout, Hf, Wf), np.float32)
    out += bias[None, :, None, None]
    for kh in range(3):
        for kw in range(3):
            contrib = np.einsum("ncij,co->noij", x, weight[:, :, kh, kw])
            out[:, :, kh:kh + 2 * H:2, kw:kw + 2 * W:2] += contrib
    Hs, Ws = skip.shape[2], skip.shape[3]
    oy = (Hf - Hs) // 2
    ox = (Wf - Ws) // 2
    out = out[:, :, oy:oy + Hs, ox:ox + Ws]
    return np.concatenate([out, skip], axis=1)


if __name__ == "__main__":
    key = jax.random.PRNGKey(0)
    k1, k2, k3, k4 = jax.random.split(key, 4)

    N, Cin, H, W = 2, 6, 8, 8
    Cout = 4
    Cskip, Hs, Ws = 5, 16, 16        # skip spatial must be <= 2H+1, 2W+1

    x = jax.random.normal(k1, (N, Cin, H, W), jnp.float32)
    skip = jax.random.normal(k2, (N, Cskip, Hs, Ws), jnp.float32)
    weight = jax.random.normal(k3, (Cin, Cout, 3, 3), jnp.float32) * 0.1
    bias = jax.random.normal(k4, (Cout,), jnp.float32) * 0.1

    ref = ref_transition_up(np.asarray(x), np.asarray(weight),
                            np.asarray(bias), np.asarray(skip))

    # Exact-numerics path (f32 compute) — strict tolerance vs the reference.
    out_f32 = jax.block_until_ready(
        transition_up(x, skip, weight, bias, compute_dtype=jnp.float32))
    assert out_f32.shape == ref.shape, (out_f32.shape, ref.shape)
    np.testing.assert_allclose(np.asarray(out_f32), ref, rtol=1e-3, atol=1e-3)

    # Default fast path (bf16 compute + bf16 slab, f32 accumulation) — relaxed.
    out_bf16 = jax.block_until_ready(transition_up(x, skip, weight, bias))
    assert out_bf16.shape == ref.shape, (out_bf16.shape, ref.shape)
    np.testing.assert_allclose(np.asarray(out_bf16), ref, rtol=4e-2, atol=4e-2)

    print("KERNEL_OK")
</pallas_src>

<mosaic_0001>
module attributes {stable_mosaic.version = 11 : i64} {
  func.func @_fused_tap_matmul_kernel(%arg0: i32, %arg1: i32, %arg2: memref<1x64x8xf32, #tpu.memory_space<vmem>>, %arg3: memref<8x128xf32, #tpu.memory_space<vmem>>, %arg4: memref<1x64x128xf32, #tpu.memory_space<vmem>>) attributes {dimension_semantics = [#tpu.dimension_semantics<parallel>, #tpu.dimension_semantics<parallel>], iteration_bounds = array<i64: 2, 1>, scalar_prefetch = 0 : i64, scratch_operands = 0 : i64, tpu.core_type = #tpu.core_type<tc>, window_params = [{transform_indices = @transform_0, window_bounds = array<i64: 1, 64, 8>}, {pipeline_mode = #tpu.pipeline_mode<synchronous>, transform_indices = @transform_1, window_bounds = array<i64: 8, 128>}, {transform_indices = @transform_2, window_bounds = array<i64: 1, 64, 128>}]} {
    %c0 = arith.constant 0 : index
    %c0_0 = arith.constant 0 : index
    %c0_1 = arith.constant 0 : index
    %0 = vector.load %arg2[%c0, %c0_0, %c0_1] : memref<1x64x8xf32, #tpu.memory_space<vmem>>, vector<1x64x8xf32>
    %1 = vector.shape_cast %0 : vector<1x64x8xf32> to vector<64x8xf32>
    %c0_2 = arith.constant 0 : index
    %c0_3 = arith.constant 0 : index
    %2 = vector.load %arg3[%c0_2, %c0_3] : memref<8x128xf32, #tpu.memory_space<vmem>>, vector<8x128xf32>
    %cst = arith.constant dense<0.000000e+00> : vector<64x128xf32>
    %3 = tpu.matmul %1, %2, %cst {dimension_numbers = #tpu.dot_dimension_numbers<[1], [0], [0], [1], [0, 0, 1, 1], [], []>} : vector<64x8xf32>, vector<8x128xf32>, vector<64x128xf32> -> vector<64x128xf32>
    %c0_4 = arith.constant 0 : index
    %c0_5 = arith.constant 0 : index
    %c0_6 = arith.constant 0 : index
    %4 = vector.load %arg4[%c0_4, %c0_5, %c0_6] : memref<1x64x128xf32, #tpu.memory_space<vmem>>, vector<1x64x128xf32>
    %5 = vector.shape_cast %4 : vector<1x64x128xf32> to vector<64x128xf32>
    %6 = vector.shape_cast %3 : vector<64x128xf32> to vector<1x64x128xf32>
    tpu.vector_store %arg4[%c0_4, %c0_5, %c0_6], %6 {strides = array<i32>} : memref<1x64x128xf32, #tpu.memory_space<vmem>>, vector<1x64x128xf32>,
    return
  }
  func.func @transform_0(%arg0: i32, %arg1: i32) -> (i32, i32, i32) {
    %c0_i32 = arith.constant 0 : i32
    %c0_i32_0 = arith.constant 0 : i32
    return %arg0, %arg1, %c0_i32 : i32, i32, i32
  }
  func.func @transform_1(%arg0: i32, %arg1: i32) -> (i32, i32) {
    %c0_i32 = arith.constant 0 : i32
    %c0_i32_0 = arith.constant 0 : i32
    %c0_i32_1 = arith.constant 0 : i32
    return %c0_i32, %c0_i32_0 : i32, i32
  }
  func.func @transform_2(%arg0: i32, %arg1: i32) -> (i32, i32, i32) {
    %c0_i32 = arith.constant 0 : i32
    %c0_i32_0 = arith.constant 0 : i32
    return %arg0, %arg1, %c0_i32 : i32, i32, i32
  }
}

module attributes {stable_mosaic.version = 11 : i64} {
  func.func @_fused_tap_matmul_kernel(%arg0: i32, %arg1: i32, %arg2: memref<1x64x8xf32, #tpu.memory_space<vmem>>, %arg3: memref<8x128xf32, #tpu.memory_space<vmem>>, %arg4: memref<1x64x128xf32, #tpu.memory_space<vmem>>) attributes {dimension_semantics = [#tpu.dimension_semantics<parallel>, #tpu.dimension_semantics<parallel>], iteration_bounds = array<i64: 2, 1>, scalar_prefetch = 0 : i64, scratch_operands = 0 : i64, tpu.core_type = #tpu.core_type<tc>, window_params = [{transform_indices = @transform_0, window_bounds = array<i64: 1, 64, 8>}, {pipeline_mode = #tpu.pipeline_mode<synchronous>, transform_indices = @transform_1, window_bounds = array<i64: 8, 128>}, {transform_indices = @transform_2, window_bounds = array<i64: 1, 64, 128>}]} {
    %c0 = arith.constant 0 : index
    %c0_0 = arith.constant 0 : index
    %c0_1 = arith.constant 0 : index
    %0 = vector.load %arg2[%c0, %c0_0, %c0_1] : memref<1x64x8xf32, #tpu.memory_space<vmem>>, vector<1x64x8xf32>
    %1 = vector.shape_cast %0 : vector<1x64x8xf32> to vector<64x8xf32>
    %c0_2 = arith.constant 0 : index
    %c0_3 = arith.constant 0 : index
    %2 = vector.load %arg3[%c0_2, %c0_3] : memref<8x128xf32, #tpu.memory_space<vmem>>, vector<8x128xf32>
    %cst = arith.constant dense<0.000000e+00> : vector<64x128xf32>
    %3 = tpu.matmul %1, %2, %cst {dimension_numbers = #tpu.dot_dimension_numbers<[1], [0], [0], [1], [0, 0, 1, 1], [], []>} : vector<64x8xf32>, vector<8x128xf32>, vector<64x128xf32> -> vector<64x128xf32>
    %c0_4 = arith.constant 0 : index
    %c0_5 = arith.constant 0 : index
    %c0_6 = arith.constant 0 : index
    %4 = vector.load %arg4[%c0_4, %c0_5, %c0_6] : memref<1x64x128xf32, #tpu.memory_space<vmem>>, vector<1x64x128xf32>
    %5 = vector.shape_cast %4 : vector<1x64x128xf32> to vector<64x128xf32>
    %6 = vector.shape_cast %3 : vector<64x128xf32> to vector<1x64x128xf32>
    tpu.vector_store %arg4[%c0_4, %c0_5, %c0_6], %6 {strides = array<i32>} : memref<1x64x128xf32, #tpu.memory_space<vmem>>, vector<1x64x128xf32>,
    return
  }
  func.func @transform_0(%arg0: i32, %arg1: i32) -> (i32, i32, i32) {
    %c0_i32 = arith.constant 0 : i32
    %c0_i32_0 = arith.constant 0 : i32
    return %arg0, %arg1, %c0_i32 : i32, i32, i32
  }
  func.func @transform_1(%arg0: i32, %arg1: i32) -> (i32, i32) {
    %c0_i32 = arith.constant 0 : i32
    %c0_i32_0 = arith.constant 0 : i32
    %c0_i32_1 = arith.constant 0 : i32
    return %c0_i32, %c0_i32_0 : i32, i32
  }
  func.func @transform_2(%arg0: i32, %arg1: i32) -> (i32, i32, i32) {
    %c0_i32 = arith.constant 0 : i32
    %c0_i32_0 = arith.constant 0 : i32
    return %arg0, %arg1, %c0_i32 : i32, i32, i32
  }
}

</mosaic_0001>

<llo_original>
// kernel: tpu_custom_call.1
$region0: #{tpu_custom_call.1}
  #allocation0 [shape = 'u32[]', space=smem, size = 0x4, offset = 0x4, fixed_abs, tag = 'smem constant byte address 0x4 - core index']
  #allocation1 [shape = 'u32[72,128]{1,0:T(1,128)}', space=vmem, size = 0x9000, scoped, tag = 'internal scratch']
  %s0 = inlined_call_operand.vmem [shape: f32[2,64,8], index: 0, kind: input, shape index: {}]
  %s1 = inlined_call_operand.vmem [shape: f32[8,128], index: 1, kind: input, shape index: {}]
  %s2 = inlined_call_operand.hbm [shape: f32[2,64,128], index: 2, kind: output, shape index: {}]
  %s3 = sld [smem:[#allocation0]]
  $region41: #{tpu_custom_call.1} parent=0
    _
  %s5 = ssub.s32 1, %s3
  %s6 = scalar_select 0, %s5, %s3
  $region1: #{tpu_custom_call.1} parent=0
    #allocation2 [shape = 'u8[65536]{0}', space=vmem, size = 0x10000, scoped, tag = 'output window, operand 0']
    #allocation3 [shape = 's32[2]{0}', space=sflag, size = 0x8, scoped, tag = 'scoped memory for tpu_custom_call.1']
    %7 = vsyncpa [#allocation3], 0
    %s8 = scalar_lea.sflag [#allocation3], 1
    %9 = vsyncpa %s8, 0
    loop: start=0, step=1, limit=4
    $region2: #{tpu_custom_call.1} parent=1 // loop_pre_header
      _
    $region3: #{tpu_custom_call.1} parent=1 // loop_header
      %s11 = sphi 0, %s15
      %p12 = scmp.ge.s32.totalorder %s11, 4
      %s18 = sphi 0, %s30
      %s19 = sphi 0, %s26
      %s20 = sphi 0, %s18
      %s21 = sphi 0, %s19
      %s22 = sphi 0, %s20
      %s23 = sphi 0, %s21
      %s35 = sphi 0, %s37
      %s38 = sphi 0, %s35
      %s39 = sphi 0, %s38
      %s55 = sphi 0, %s39
      %s59 = sphi 0, %s59
      %s61 = sphi 0, %s59
      %s62 = sphi 0, %s61
      %s76 = sphi 0, %s62
      %s84 = sphi 0, %s86
      %s87 = sphi 0, %s84
      %s88 = sphi 0, %s87
      %s104 = sphi 0, %s88
    $region4: #{tpu_custom_call.1} parent=1 // loop_header_branch
      %14 = sbr.rel (%p12) target = $region8
    $region5: #{tpu_custom_call.1} parent=1 // loop_body
      %s16 = ssub.s32 %s11, 1
      %s17 = ssub.s32 %s11, 2
      %s24 = sadd.s32 1, %s19
      %p25 = scmp.ge.s32.totalorder %s24, 1
      %s26 = scalar_select %p25, 0, %s24
      %s27 = sadd.s32 1, %s18
      %s28 = scalar_select %p25, %s27, %s18
      %p29 = scmp.ge.s32.totalorder %s28, 2
      %s30 = scalar_select %p29, 0, %s28
      %s31 = ssub.s32 %s18, %s30
      %s32 = ssub.s32 %s19, %s26
      %s33 = sor.u32 %s31, %s32
      %p34 = scmp.eq.s32.totalorder %s33, 0
      %s36 = sadd.s32 %s35, 1
      %s37 = scalar_select %p34, %s35, %s36
      %p40 = pneg %p34
      %p41 = scmp.eq.s32.totalorder %s11, 1
      %p42 = por %p40, %p41
      %p43 = scmp.ne.s32.totalorder %s35, %s38
      %p44 = scmp.eq.s32.totalorder %s11, 0
      %p45 = por %p43, %p44
      %p46 = scmp.ne.s32.totalorder %s35, %s38
      %p47 = scmp.eq.s32.totalorder %s16, 1
      %p48 = por %p46, %p47
      %p49 = scmp.ne.s32.totalorder %s38, %s39
      %p50 = scmp.eq.s32.totalorder %s16, 0
      %p51 = por %p49, %p50
      %p52 = scmp.ne.s32.totalorder %s38, %s39
      %p53 = scmp.eq.s32.totalorder %s17, 1
      %p54 = por %p52, %p53
      %p56 = scmp.ne.s32.totalorder %s39, %s55
      %p57 = scmp.eq.s32.totalorder %s17, 0
      %p58 = por %p56, %p57
      %s60 = sadd.s32 %s59, 1
      %p63 = scmp.eq.s32.totalorder %s11, 1
      %p64 = scmp.ne.s32.totalorder %s59, %s61
      %p65 = scmp.eq.s32.totalorder %s11, 0
      %p66 = por %p64, %p65
      %p67 = scmp.ne.s32.totalorder %s59, %s61
      %p68 = scmp.eq.s32.totalorder %s16, 1
      %p69 = por %p67, %p68
      %p70 = scmp.ne.s32.totalorder %s61, %s62
      %p71 = scmp.eq.s32.totalorder %s16, 0
      %p72 = por %p70, %p71
      %p73 = scmp.ne.s32.totalorder %s61, %s62
      %p74 = scmp.eq.s32.totalorder %s17, 1
      %p75 = por %p73, %p74
      %p77 = scmp.ne.s32.totalorder %s62, %s76
      %p78 = scmp.eq.s32.totalorder %s17, 0
      %p79 = por %p77, %p78
      %s80 = ssub.s32 %s18, %s30
      %s81 = ssub.s32 %s19, %s26
      %s82 = sor.u32 %s80, %s81
      %p83 = scmp.eq.s32.totalorder %s82, 0
      %s85 = sadd.s32 %s84, 1
      %s86 = scalar_select %p83, %s84, %s85
      %p89 = pneg %p83
      %p90 = scmp.eq.s32.totalorder %s11, 1
      %p91 = por %p89, %p90
      %p92 = scmp.ne.s32.totalorder %s84, %s87
      %p93 = scmp.eq.s32.totalorder %s11, 0
      %p94 = por %p92, %p93
      %p95 = scmp.ne.s32.totalorder %s84, %s87
      %p96 = scmp.eq.s32.totalorder %s16, 1
      %p97 = por %p95, %p96
      %p98 = scmp.ne.s32.totalorder %s87, %s88
      %p99 = scmp.eq.s32.totalorder %s16, 0
      %p100 = por %p98, %p99
      %p101 = scmp.ne.s32.totalorder %s87, %s88
      %p102 = scmp.eq.s32.totalorder %s17, 1
      %p103 = por %p101, %p102
      %p105 = scmp.ne.s32.totalorder %s88, %s104
      %p106 = scmp.eq.s32.totalorder %s17, 0
      %p107 = por %p105, %p106
      %p108 = scmp.le.s32.totalorder 1, %s11
      %p109 = scmp.lt.s32.totalorder %s11, 3
      %p110 = pnand %p108, %p109
      %p111 = pneg %p110
      // Predicated region
      $region9: #{tpu_custom_call.1} parent=5 // pred_check
        _
      $region10: #{tpu_custom_call.1} parent=5 // pred_check_branch
        %113 = sbr.rel (%p110) target = $region12
      $region11: #{tpu_custom_call.1} parent=5 // pred_region
        %s114 = ssub.s32 %s11, 1
        // Predicated region
        $region13: #{tpu_custom_call.1} parent=11 // pred_check
          %p115 = pneg %p72
        $region14: #{tpu_custom_call.1} parent=11 // pred_check_branch
          %117 = sbr.rel (%p115) target = $region16
        $region15: #{tpu_custom_call.1} parent=11 // pred_region
          _
        $region16: #{tpu_custom_call.1} parent=11 // pred_fallthru
          _
      $region12: #{tpu_custom_call.1} parent=5 // pred_fallthru
        _
      %p118 = scmp.lt.s32.totalorder %s11, 2
      // Predicated region
      $region17: #{tpu_custom_call.1} parent=5 // pred_check
        %p119 = pneg %p118
      $region18: #{tpu_custom_call.1} parent=5 // pred_check_branch
        %121 = sbr.rel (%p119) target = $region20
      $region19: #{tpu_custom_call.1} parent=5 // pred_region
        // Predicated region
        $region21: #{tpu_custom_call.1} parent=19 // pred_check
          %p122 = pneg %p45
        $region22: #{tpu_custom_call.1} parent=19 // pred_check_branch
          %124 = sbr.rel (%p122) target = $region24
        $region23: #{tpu_custom_call.1} parent=19 // pred_region
          %s125 = smul.u32 8, %s19
          %p126 = scmp.lt.s32.totalorder %s18, 1
          %s127 = scalar_select %p126, %s18, 1
          %p128 = scmp.lt.s32.totalorder %s125, 7
          %s129 = scalar_select %p128, %s125, 7
          %s130 = smul.addr %s127, 8
          %s131 = sadd.s32 %s129, %s130
          %s132 = smul.addr %s131, 8
          %s133 = scalar_lea.vmem %s0, %s132
          %s134 = smul.u32 8, %s19
        $region24: #{tpu_custom_call.1} parent=19 // pred_fallthru
          _
      $region20: #{tpu_custom_call.1} parent=5 // pred_fallthru
        _
      %p135 = scmp.le.s32.totalorder 1, %s11
      %p136 = scmp.lt.s32.totalorder %s11, 3
      %p137 = pnand %p135, %p136
      %p138 = pneg %p137
      // Predicated region
      $region25: #{tpu_custom_call.1} parent=5 // pred_check
        _
      $region26: #{tpu_custom_call.1} parent=5 // pred_check_branch
        %140 = sbr.rel (%p137) target = $region28
      $region27: #{tpu_custom_call.1} parent=5 // pred_region
        %s141 = ssub.s32 %s11, 1
        %s142 = smul.u32 8, %s21
        %p143 = scmp.lt.s32.totalorder %s20, 1
        %s144 = scalar_select %p143, %s20, 1
        %p145 = scmp.lt.s32.totalorder %s142, 7
        %s146 = scalar_select %p145, %s142, 7
        %s147 = smul.addr %s144, 8
        %s148 = sadd.s32 %s146, %s147
        %s149 = smul.addr %s148, 8
        %s150 = scalar_lea.vmem %s0, %s149
        %p151 = pneg %p51
        %p152 = pneg %p48
        %p153 = pneg %p72
        %p154 = pneg %p69
        %p155 = pneg %p100
        %p156 = pneg %p97
        %s157 = sand.u32 %s87, 1
        %s158 = scalar_lea.sflag [#allocation3], %s157
        %s159 = sand.u32 %s87, 1
        %s160 = smul.addr %s159, 64
        %s161 = scalar_lea.vmem [#allocation2], %s160
        %s162 = smul.u32 8, %s21
        %p163 = scmp.lt.s32.totalorder %s20, 1
        %s164 = scalar_select %p163, %s20, 1
        %p165 = scmp.lt.s32.totalorder %s162, 7
        %s166 = scalar_select %p165, %s162, 7
        %s167 = smul.addr %s164, 8
        %s168 = sadd.s32 %s166, %s167
        %s169 = smul.addr %s168, 8
        %s170 = scalar_lea.vmem %s0, %s169
        %s171 = smul.u32 8, %s21
        %s172 = smul.u32 8, %s21
        %v173 = vld [vmem:[%s170] sm:$0xff]
        %v174 = vld [vmem:[%s170 + $0x8] sm:$0xff]
        %v175 = vld [vmem:[%s170 + $0x10] sm:$0xff]
        %v176 = vld [vmem:[%s170 + $0x18] sm:$0xff]
        %v177 = vld [vmem:[%s170 + $0x20] sm:$0xff]
        %v178 = vld [vmem:[%s170 + $0x28] sm:$0xff]
        %v179 = vld [vmem:[%s170 + $0x30] sm:$0xff]
        %v180 = vld [vmem:[%s170 + $0x38] sm:$0xff]
        %v181 = vld [vmem:[%s1] sm:$0xff]
        %vm182 = vcmask 64512
        %v184 = vsel %vm182, %v173, 0
        %v187 = vsel %vm182, %v174, 0
        %v190 = vsel %vm182, %v175, 0
        %v193 = vsel %vm182, %v176, 0
        %v196 = vsel %vm182, %v177, 0
        %v199 = vsel %vm182, %v178, 0
        %v202 = vsel %vm182, %v179, 0
        %v205 = vsel %vm182, %v180, 0
        %207 = vmatpush.msra.mxu0 0.0
        %208 = vmatpush.msra.mxu0 0.0
        %209 = vmatpush.msra.mxu0 0.0
        %210 = vmatpush.msra.mxu0 0.0
        %211 = vmatpush.msra.mxu0 0.0
        %212 = vmatpush.msra.mxu0 0.0
        %213 = vmatpush.msra.mxu0 0.0
        %214 = vmatpush.msra.mxu0 0.0
        %215 = vmatpush.msra.mxu0 0.0
        %216 = vmatpush.msra.mxu0 0.0
        %217 = vmatpush.msra.mxu0 0.0
        %218 = vmatpush.msra.mxu0 0.0
        %219 = vmatpush.msra.mxu0 0.0
        %220 = vmatpush.msra.mxu0 0.0
        %221 = vmatpush.msra.mxu0 0.0
        %222 = vmatpush.msra.mxu0 %v181
        %223 = vmatmul.f32.gmra.mxu0 %v184
        %v224 = vpop.f32.mrf.mxu0
        %v225 = vadd.f32 0.0, %v224
        %226 = vmatmul.f32.gmra.mxu0 %v187
        %v227 = vpop.f32.mrf.mxu0
        %v228 = vadd.f32 0.0, %v227
        %229 = vmatmul.f32.gmra.mxu0 %v190
        %v230 = vpop.f32.mrf.mxu0
        %v231 = vadd.f32 0.0, %v230
        %232 = vmatmul.f32.gmra.mxu0 %v193
        %v233 = vpop.f32.mrf.mxu0
        %v234 = vadd.f32 0.0, %v233
        %235 = vmatmul.f32.gmra.mxu0 %v196
        %v236 = vpop.f32.mrf.mxu0
        %v237 = vadd.f32 0.0, %v236
        %238 = vmatmul.f32.gmra.mxu0 %v199
        %v239 = vpop.f32.mrf.mxu0
        %v240 = vadd.f32 0.0, %v239
        %241 = vmatmul.f32.gmra.mxu0 %v202
        %v242 = vpop.f32.mrf.mxu0
        %v243 = vadd.f32 0.0, %v242
        %244 = vmatmul.f32.gmra.mxu0 %v205
        %v245 = vpop.f32.mrf.mxu0
        %v246 = vadd.f32 0.0, %v245
        %247 = vdwg.mxu0
        %248 = vst [vmem:[%s161] sm:$0xff] %v225
        %249 = vst [vmem:[%s161 + $0x8] sm:$0xff] %v228
        %250 = vst [vmem:[%s161 + $0x10] sm:$0xff] %v231
        %251 = vst [vmem:[%s161 + $0x18] sm:$0xff] %v234
        %252 = vst [vmem:[%s161 + $0x20] sm:$0xff] %v237
        %253 = vst [vmem:[%s161 + $0x28] sm:$0xff] %v240
        %254 = vst [vmem:[%s161 + $0x30] sm:$0xff] %v243
        %255 = vst [vmem:[%s161 + $0x38] sm:$0xff] %v246
        %s256 = sand.u32 %s87, 1
        %s257 = scalar_lea.sflag [#allocation3], %s256
        %s258 = sand.u32 %s87, 1
        %s259 = smul.addr %s258, 64
        %s260 = scalar_lea.vmem [#allocation2], %s259
        // Predicated region
        $region29: #{tpu_custom_call.1} parent=27 // pred_check
          %p261 = pneg %p97
        $region30: #{tpu_custom_call.1} parent=27 // pred_check_branch
          %263 = sbr.rel (%p261) target = $region32
        $region31: #{tpu_custom_call.1} parent=27 // pred_region
          %s264 = smul.u32 8, %s21
          %266 = vsyncadd %s257, 0
          %s267 = smul.addr %s20, 8
          %s268 = sadd.s32 %s264, %s267
          %s269 = smul.addr %s268, 8
          %s270 = scalar_lea.hbm %s2, %s269
          %s271 = sshll.u32 %s260, 4
          %s272 = int_to_ptr.vmem [resolvable:$true] %s271
          %s273 = sshll.u32 %s270, 4
          %s274 = int_to_ptr.hbm [resolvable:$true] %s273
          %279 = dma.vmem_to_hbm [thread:$0]  %s272, 1024, %s274, %s257, 128, 128, 8
        $region32: #{tpu_custom_call.1} parent=27 // pred_fallthru
          _
      $region28: #{tpu_custom_call.1} parent=5 // pred_fallthru
        _
      %p280 = scmp.le.s32.totalorder 2, %s11
      // Predicated region
      $region33: #{tpu_custom_call.1} parent=5 // pred_check
        %p281 = pneg %p280
      $region34: #{tpu_custom_call.1} parent=5 // pred_check_branch
        %283 = sbr.rel (%p281) target = $region36
      $region35: #{tpu_custom_call.1} parent=5 // pred_region
        %s284 = ssub.s32 %s11, 2
        // Predicated region
        $region37: #{tpu_custom_call.1} parent=35 // pred_check
          %p285 = pneg %p103
        $region38: #{tpu_custom_call.1} parent=35 // pred_check_branch
          %287 = sbr.rel (%p285) target = $region40
        $region39: #{tpu_custom_call.1} parent=35 // pred_region
          %s288 = sand.u32 %s88, 1
          %s289 = scalar_lea.sflag [#allocation3], %s288
          %s290 = sand.u32 %s88, 1
          %s291 = smul.addr %s290, 64
          %s292 = scalar_lea.vmem [#allocation2], %s291
          %294 = dma.done %s289, 1024
        $region40: #{tpu_custom_call.1} parent=35 // pred_fallthru
          _
      $region36: #{tpu_custom_call.1} parent=5 // pred_fallthru
        _
    $region6: #{tpu_custom_call.1} parent=1 // loop_footer
      %s15 = sadd.s32 1, %s11
    $region7: #{tpu_custom_call.1} parent=1 // loop_footer_branch
      %10 = sbr.rel target = $region3
    $region8: #{tpu_custom_call.1} parent=1 // loop_exit
      _
    %295 = vsyncpa [#allocation3], 1
    %s296 = scalar_lea.sflag [#allocation3], 1
    %297 = vsyncpa %s296, 1

// kernel: tpu_custom_call.1
$region0: #{tpu_custom_call.1}
  #allocation0 [shape = 'u32[]', space=smem, size = 0x4, offset = 0x4, fixed_abs, tag = 'smem constant byte address 0x4 - core index']
  #allocation1 [shape = 'u32[72,128]{1,0:T(1,128)}', space=vmem, size = 0x9000, scoped, tag = 'internal scratch']
  %s0 = inlined_call_operand.vmem [shape: f32[2,64,8], index: 0, kind: input, shape index: {}]
  %s1 = inlined_call_operand.vmem [shape: f32[8,128], index: 1, kind: input, shape index: {}]
  %s2 = inlined_call_operand.hbm [shape: f32[2,64,128], index: 2, kind: output, shape index: {}]
  %s3 = sld [smem:[#allocation0]]
  $region41: #{tpu_custom_call.1} parent=0
    _
  %s5 = ssub.s32 1, %s3
  %s6 = scalar_select 0, %s5, %s3
  $region1: #{tpu_custom_call.1} parent=0
    #allocation2 [shape = 'u8[65536]{0}', space=vmem, size = 0x10000, scoped, tag = 'output window, operand 0']
    #allocation3 [shape = 's32[2]{0}', space=sflag, size = 0x8, scoped, tag = 'scoped memory for tpu_custom_call.1']
    %7 = vsyncpa [#allocation3], 0
    %s8 = scalar_lea.sflag [#allocation3], 1
    %9 = vsyncpa %s8, 0
    loop: start=0, step=1, limit=4
    $region2: #{tpu_custom_call.1} parent=1 // loop_pre_header
      _
    $region3: #{tpu_custom_call.1} parent=1 // loop_header
      %s11 = sphi 0, %s15
      %p12 = scmp.ge.s32.totalorder %s11, 4
      %s18 = sphi 0, %s30
      %s19 = sphi 0, %s26
      %s20 = sphi 0, %s18
      %s21 = sphi 0, %s19
      %s22 = sphi 0, %s20
      %s23 = sphi 0, %s21
      %s35 = sphi 0, %s37
      %s38 = sphi 0, %s35
      %s39 = sphi 0, %s38
      %s55 = sphi 0, %s39
      %s59 = sphi 0, %s59
      %s61 = sphi 0, %s59
      %s62 = sphi 0, %s61
      %s76 = sphi 0, %s62
      %s84 = sphi 0, %s86
      %s87 = sphi 0, %s84
      %s88 = sphi 0, %s87
      %s104 = sphi 0, %s88
    $region4: #{tpu_custom_call.1} parent=1 // loop_header_branch
      %14 = sbr.rel (%p12) target = $region8
    $region5: #{tpu_custom_call.1} parent=1 // loop_body
      %s16 = ssub.s32 %s11, 1
      %s17 = ssub.s32 %s11, 2
      %s24 = sadd.s32 1, %s19
      %p25 = scmp.ge.s32.totalorder %s24, 1
      %s26 = scalar_select %p25, 0, %s24
      %s27 = sadd.s32 1, %s18
      %s28 = scalar_select %p25, %s27, %s18
      %p29 = scmp.ge.s32.totalorder %s28, 2
      %s30 = scalar_select %p29, 0, %s28
      %s31 = ssub.s32 %s18, %s30
      %s32 = ssub.s32 %s19, %s26
      %s33 = sor.u32 %s31, %s32
      %p34 = scmp.eq.s32.totalorder %s33, 0
      %s36 = sadd.s32 %s35, 1
      %s37 = scalar_select %p34, %s35, %s36
      %p40 = pneg %p34
      %p41 = scmp.eq.s32.totalorder %s11, 1
      %p42 = por %p40, %p41
      %p43 = scmp.ne.s32.totalorder %s35, %s38
      %p44 = scmp.eq.s32.totalorder %s11, 0
      %p45 = por %p43, %p44
      %p46 = scmp.ne.s32.totalorder %s35, %s38
      %p47 = scmp.eq.s32.totalorder %s16, 1
      %p48 = por %p46, %p47
      %p49 = scmp.ne.s32.totalorder %s38, %s39
      %p50 = scmp.eq.s32.totalorder %s16, 0
      %p51 = por %p49, %p50
      %p52 = scmp.ne.s32.totalorder %s38, %s39
      %p53 = scmp.eq.s32.totalorder %s17, 1
      %p54 = por %p52, %p53
      %p56 = scmp.ne.s32.totalorder %s39, %s55
      %p57 = scmp.eq.s32.totalorder %s17, 0
      %p58 = por %p56, %p57
      %s60 = sadd.s32 %s59, 1
      %p63 = scmp.eq.s32.totalorder %s11, 1
      %p64 = scmp.ne.s32.totalorder %s59, %s61
      %p65 = scmp.eq.s32.totalorder %s11, 0
      %p66 = por %p64, %p65
      %p67 = scmp.ne.s32.totalorder %s59, %s61
      %p68 = scmp.eq.s32.totalorder %s16, 1
      %p69 = por %p67, %p68
      %p70 = scmp.ne.s32.totalorder %s61, %s62
      %p71 = scmp.eq.s32.totalorder %s16, 0
      %p72 = por %p70, %p71
      %p73 = scmp.ne.s32.totalorder %s61, %s62
      %p74 = scmp.eq.s32.totalorder %s17, 1
      %p75 = por %p73, %p74
      %p77 = scmp.ne.s32.totalorder %s62, %s76
      %p78 = scmp.eq.s32.totalorder %s17, 0
      %p79 = por %p77, %p78
      %s80 = ssub.s32 %s18, %s30
      %s81 = ssub.s32 %s19, %s26
      %s82 = sor.u32 %s80, %s81
      %p83 = scmp.eq.s32.totalorder %s82, 0
      %s85 = sadd.s32 %s84, 1
      %s86 = scalar_select %p83, %s84, %s85
      %p89 = pneg %p83
      %p90 = scmp.eq.s32.totalorder %s11, 1
      %p91 = por %p89, %p90
      %p92 = scmp.ne.s32.totalorder %s84, %s87
      %p93 = scmp.eq.s32.totalorder %s11, 0
      %p94 = por %p92, %p93
      %p95 = scmp.ne.s32.totalorder %s84, %s87
      %p96 = scmp.eq.s32.totalorder %s16, 1
      %p97 = por %p95, %p96
      %p98 = scmp.ne.s32.totalorder %s87, %s88
      %p99 = scmp.eq.s32.totalorder %s16, 0
      %p100 = por %p98, %p99
      %p101 = scmp.ne.s32.totalorder %s87, %s88
      %p102 = scmp.eq.s32.totalorder %s17, 1
      %p103 = por %p101, %p102
      %p105 = scmp.ne.s32.totalorder %s88, %s104
      %p106 = scmp.eq.s32.totalorder %s17, 0
      %p107 = por %p105, %p106
      %p108 = scmp.le.s32.totalorder 1, %s11
      %p109 = scmp.lt.s32.totalorder %s11, 3
      %p110 = pnand %p108, %p109
      %p111 = pneg %p110
      // Predicated region
      $region9: #{tpu_custom_call.1} parent=5 // pred_check
        _
      $region10: #{tpu_custom_call.1} parent=5 // pred_check_branch
        %113 = sbr.rel (%p110) target = $region12
      $region11: #{tpu_custom_call.1} parent=5 // pred_region
        %s114 = ssub.s32 %s11, 1
        // Predicated region
        $region13: #{tpu_custom_call.1} parent=11 // pred_check
          %p115 = pneg %p72
        $region14: #{tpu_custom_call.1} parent=11 // pred_check_branch
          %117 = sbr.rel (%p115) target = $region16
        $region15: #{tpu_custom_call.1} parent=11 // pred_region
          _
        $region16: #{tpu_custom_call.1} parent=11 // pred_fallthru
          _
      $region12: #{tpu_custom_call.1} parent=5 // pred_fallthru
        _
      %p118 = scmp.lt.s32.totalorder %s11, 2
      // Predicated region
      $region17: #{tpu_custom_call.1} parent=5 // pred_check
        %p119 = pneg %p118
      $region18: #{tpu_custom_call.1} parent=5 // pred_check_branch
        %121 = sbr.rel (%p119) target = $region20
      $region19: #{tpu_custom_call.1} parent=5 // pred_region
        // Predicated region
        $region21: #{tpu_custom_call.1} parent=19 // pred_check
          %p122 = pneg %p45
        $region22: #{tpu_custom_call.1} parent=19 // pred_check_branch
          %124 = sbr.rel (%p122) target = $region24
        $region23: #{tpu_custom_call.1} parent=19 // pred_region
          %s125 = smul.u32 8, %s19
          %p126 = scmp.lt.s32.totalorder %s18, 1
          %s127 = scalar_select %p126, %s18, 1
          %p128 = scmp.lt.s32.totalorder %s125, 7
          %s129 = scalar_select %p128, %s125, 7
          %s130 = smul.addr %s127, 8
          %s131 = sadd.s32 %s129, %s130
          %s132 = smul.addr %s131, 8
          %s133 = scalar_lea.vmem %s0, %s132
          %s134 = smul.u32 8, %s19
        $region24: #{tpu_custom_call.1} parent=19 // pred_fallthru
          _
      $region20: #{tpu_custom_call.1} parent=5 // pred_fallthru
        _
      %p135 = scmp.le.s32.totalorder 1, %s11
      %p136 = scmp.lt.s32.totalorder %s11, 3
      %p137 = pnand %p135, %p136
      %p138 = pneg %p137
      // Predicated region
      $region25: #{tpu_custom_call.1} parent=5 // pred_check
        _
      $region26: #{tpu_custom_call.1} parent=5 // pred_check_branch
        %140 = sbr.rel (%p137) target = $region28
      $region27: #{tpu_custom_call.1} parent=5 // pred_region
        %s141 = ssub.s32 %s11, 1
        %s142 = smul.u32 8, %s21
        %p143 = scmp.lt.s32.totalorder %s20, 1
        %s144 = scalar_select %p143, %s20, 1
        %p145 = scmp.lt.s32.totalorder %s142, 7
        %s146 = scalar_select %p145, %s142, 7
        %s147 = smul.addr %s144, 8
        %s148 = sadd.s32 %s146, %s147
        %s149 = smul.addr %s148, 8
        %s150 = scalar_lea.vmem %s0, %s149
        %p151 = pneg %p51
        %p152 = pneg %p48
        %p153 = pneg %p72
        %p154 = pneg %p69
        %p155 = pneg %p100
        %p156 = pneg %p97
        %s157 = sand.u32 %s87, 1
        %s158 = scalar_lea.sflag [#allocation3], %s157
        %s159 = sand.u32 %s87, 1
        %s160 = smul.addr %s159, 64
        %s161 = scalar_lea.vmem [#allocation2], %s160
        %s162 = smul.u32 8, %s21
        %p163 = scmp.lt.s32.totalorder %s20, 1
        %s164 = scalar_select %p163, %s20, 1
        %p165 = scmp.lt.s32.totalorder %s162, 7
        %s166 = scalar_select %p165, %s162, 7
        %s167 = smul.addr %s164, 8
        %s168 = sadd.s32 %s166, %s167
        %s169 = smul.addr %s168, 8
        %s170 = scalar_lea.vmem %s0, %s169
        %s171 = smul.u32 8, %s21
        %s172 = smul.u32 8, %s21
        %v173 = vld [vmem:[%s170] sm:$0xff]
        %v174 = vld [vmem:[%s170 + $0x8] sm:$0xff]
        %v175 = vld [vmem:[%s170 + $0x10] sm:$0xff]
        %v176 = vld [vmem:[%s170 + $0x18] sm:$0xff]
        %v177 = vld [vmem:[%s170 + $0x20] sm:$0xff]
        %v178 = vld [vmem:[%s170 + $0x28] sm:$0xff]
        %v179 = vld [vmem:[%s170 + $0x30] sm:$0xff]
        %v180 = vld [vmem:[%s170 + $0x38] sm:$0xff]
        %v181 = vld [vmem:[%s1] sm:$0xff]
        %vm182 = vcmask 64512
        %v184 = vsel %vm182, %v173, 0
        %v187 = vsel %vm182, %v174, 0
        %v190 = vsel %vm182, %v175, 0
        %v193 = vsel %vm182, %v176, 0
        %v196 = vsel %vm182, %v177, 0
        %v199 = vsel %vm182, %v178, 0
        %v202 = vsel %vm182, %v179, 0
        %v205 = vsel %vm182, %v180, 0
        %207 = vmatpush.msra.mxu0 0.0
        %208 = vmatpush.msra.mxu0 0.0
        %209 = vmatpush.msra.mxu0 0.0
        %210 = vmatpush.msra.mxu0 0.0
        %211 = vmatpush.msra.mxu0 0.0
        %212 = vmatpush.msra.mxu0 0.0
        %213 = vmatpush.msra.mxu0 0.0
        %214 = vmatpush.msra.mxu0 0.0
        %215 = vmatpush.msra.mxu0 0.0
        %216 = vmatpush.msra.mxu0 0.0
        %217 = vmatpush.msra.mxu0 0.0
        %218 = vmatpush.msra.mxu0 0.0
        %219 = vmatpush.msra.mxu0 0.0
        %220 = vmatpush.msra.mxu0 0.0
        %221 = vmatpush.msra.mxu0 0.0
        %222 = vmatpush.msra.mxu0 %v181
        %223 = vmatmul.f32.gmra.mxu0 %v184
        %v224 = vpop.f32.mrf.mxu0
        %v225 = vadd.f32 0.0, %v224
        %226 = vmatmul.f32.gmra.mxu0 %v187
        %v227 = vpop.f32.mrf.mxu0
        %v228 = vadd.f32 0.0, %v227
        %229 = vmatmul.f32.gmra.mxu0 %v190
        %v230 = vpop.f32.mrf.mxu0
        %v231 = vadd.f32 0.0, %v230
        %232 = vmatmul.f32.gmra.mxu0 %v193
        %v233 = vpop.f32.mrf.mxu0
        %v234 = vadd.f32 0.0, %v233
        %235 = vmatmul.f32.gmra.mxu0 %v196
        %v236 = vpop.f32.mrf.mxu0
        %v237 = vadd.f32 0.0, %v236
        %238 = vmatmul.f32.gmra.mxu0 %v199
        %v239 = vpop.f32.mrf.mxu0
        %v240 = vadd.f32 0.0, %v239
        %241 = vmatmul.f32.gmra.mxu0 %v202
        %v242 = vpop.f32.mrf.mxu0
        %v243 = vadd.f32 0.0, %v242
        %244 = vmatmul.f32.gmra.mxu0 %v205
        %v245 = vpop.f32.mrf.mxu0
        %v246 = vadd.f32 0.0, %v245
        %247 = vdwg.mxu0
        %248 = vst [vmem:[%s161] sm:$0xff] %v225
        %249 = vst [vmem:[%s161 + $0x8] sm:$0xff] %v228
        %250 = vst [vmem:[%s161 + $0x10] sm:$0xff] %v231
        %251 = vst [vmem:[%s161 + $0x18] sm:$0xff] %v234
        %252 = vst [vmem:[%s161 + $0x20] sm:$0xff] %v237
        %253 = vst [vmem:[%s161 + $0x28] sm:$0xff] %v240
        %254 = vst [vmem:[%s161 + $0x30] sm:$0xff] %v243
        %255 = vst [vmem:[%s161 + $0x38] sm:$0xff] %v246
        %s256 = sand.u32 %s87, 1
        %s257 = scalar_lea.sflag [#allocation3], %s256
        %s258 = sand.u32 %s87, 1
        %s259 = smul.addr %s258, 64
        %s260 = scalar_lea.vmem [#allocation2], %s259
        // Predicated region
        $region29: #{tpu_custom_call.1} parent=27 // pred_check
          %p261 = pneg %p97
        $region30: #{tpu_custom_call.1} parent=27 // pred_check_branch
          %263 = sbr.rel (%p261) target = $region32
        $region31: #{tpu_custom_call.1} parent=27 // pred_region
          %s264 = smul.u32 8, %s21
          %266 = vsyncadd %s257, 0
          %s267 = smul.addr %s20, 8
          %s268 = sadd.s32 %s264, %s267
          %s269 = smul.addr %s268, 8
          %s270 = scalar_lea.hbm %s2, %s269
          %s271 = sshll.u32 %s260, 4
          %s272 = int_to_ptr.vmem [resolvable:$true] %s271
          %s273 = sshll.u32 %s270, 4
          %s274 = int_to_ptr.hbm [resolvable:$true] %s273
          %279 = dma.vmem_to_hbm [thread:$0]  %s272, 1024, %s274, %s257, 128, 128, 8
        $region32: #{tpu_custom_call.1} parent=27 // pred_fallthru
          _
      $region28: #{tpu_custom_call.1} parent=5 // pred_fallthru
        _
      %p280 = scmp.le.s32.totalorder 2, %s11
      // Predicated region
      $region33: #{tpu_custom_call.1} parent=5 // pred_check
        %p281 = pneg %p280
      $region34: #{tpu_custom_call.1} parent=5 // pred_check_branch
        %283 = sbr.rel (%p281) target = $region36
      $region35: #{tpu_custom_call.1} parent=5 // pred_region
        %s284 = ssub.s32 %s11, 2
        // Predicated region
        $region37: #{tpu_custom_call.1} parent=35 // pred_check
          %p285 = pneg %p103
        $region38: #{tpu_custom_call.1} parent=35 // pred_check_branch
          %287 = sbr.rel (%p285) target = $region40
        $region39: #{tpu_custom_call.1} parent=35 // pred_region
          %s288 = sand.u32 %s88, 1
          %s289 = scalar_lea.sflag [#allocation3], %s288
          %s290 = sand.u32 %s88, 1
          %s291 = smul.addr %s290, 64
          %s292 = scalar_lea.vmem [#allocation2], %s291
          %294 = dma.done %s289, 1024
        $region40: #{tpu_custom_call.1} parent=35 // pred_fallthru
          _
      $region36: #{tpu_custom_call.1} parent=5 // pred_fallthru
        _
    $region6: #{tpu_custom_call.1} parent=1 // loop_footer
      %s15 = sadd.s32 1, %s11
    $region7: #{tpu_custom_call.1} parent=1 // loop_footer_branch
      %10 = sbr.rel target = $region3
    $region8: #{tpu_custom_call.1} parent=1 // loop_exit
      _
    %295 = vsyncpa [#allocation3], 1
    %s296 = scalar_lea.sflag [#allocation3], 1
    %297 = vsyncpa %s296, 1

</llo_original>
